<compile_context>
chip_gen: v5e
topology: v5e:2x2
jax: 0.10.0
libtpu: 0.0.40
codegen_flags: <defaults>
</compile_context>

<pallas_src>
import functools

import jax
import jax.numpy as jnp
from jax.experimental import pallas as pl
from jax.experimental.pallas import tpu as pltpu


# ---------------------------------------------------------------------------
# HPF filter bank conv: (N, 1, H, W) -> (N, 30, H, W), 5x5 taps, padding=2.
# ---------------------------------------------------------------------------

def _hpf_conv_kernel(x_ref, w_ref, o_ref, *, th, w, ksize):
    """One (batch, row-tile) step of the 5x5 HPF filter bank as an MXU matmul.

    x_ref: (1, 5, (th+4)*w) VMEM  - dx-shifted, height-padded, row-flattened input
    w_ref: (30, 25)         VMEM  - filter bank, taps flattened (dy, dx) row-major
    o_ref: (1, 30, th*w)    VMEM  - lane-dense output pixels for this row tile
    """
    hw = th * w
    # im2col patch matrix (25, th*w), built ONCE per grid step: for each dy, the
    # window [dy*w, dy*w + th*w) of all 5 dx-shifted copies is a lane-dense slice.
    # Row order dy*5 + dx matches hpf_weight.reshape(30, 25) column order.
    patches = jnp.concatenate(
        [x_ref[0, :, dy * w: dy * w + hw] for dy in range(ksize)], axis=0)
    # Single MXU matmul replaces 25 taps x 30 channels of f32 VALU multiply-adds.
    acc = jnp.dot(w_ref[...], patches.astype(jnp.float32),
                  preferred_element_type=jnp.float32)            # (30, th*w) f32
    o_ref[0] = acc.astype(o_ref.dtype)


def _pick_row_tile(h, w, co, ksize, itemsize, budget_bytes):
    """Largest row tile whose double-buffered in+out blocks fit the VMEM budget."""
    pad = ksize // 2

    def fits(th):
        in_b = ksize * (th + 2 * pad) * w * itemsize
        out_b = co * th * w * itemsize
        return 2 * (in_b + out_b) + co * ksize * ksize * 4 <= budget_bytes

    if fits(h):
        return h
    for th in sorted((d for d in range(1, h) if h % d == 0), reverse=True):
        # tile-edge output blocks must stay lane-dense multiples of 128
        if (th * w) % 128 == 0 and fits(th):
            return th
    # TODO(synk): images too wide for any row tile would also need width tiling.
    return h


def hpf_w_forward(x, hpf_weight, *, vmem_budget_bytes=12 * 1024 * 1024):
    """x: (N, 1, H, W); hpf_weight: (30, 1, 5, 5)  ->  (N, 30, H, W)."""
    n, cin, h, w = x.shape
    assert cin == 1, "HPF_W expects a single input channel"
    co, _, kh, kw = hpf_weight.shape
    assert kh == 5 and kw == 5
    pad = kh // 2

    th = _pick_row_tile(h, w, co, kh, jnp.dtype(x.dtype).itemsize, vmem_budget_bytes)
    n_rt = h // th

    # padding=2 conv semantics (+4 rows/cols only).  The 5 width-shifted copies
    # make every (dy, dx) tap a contiguous lane-dense window of a flattened row
    # block, so the kernel needs no lane-sparse 2-D slices and no unsupported
    # (H, W) -> (H*W) relayouts.  Extra wrapper traffic is ~5x the single-channel
    # input, small next to the 30-channel output.
    xp = jnp.pad(x[:, 0], ((0, 0), (pad, pad), (pad, pad)))            # (N, H+4, W+4)
    xs = jnp.stack([xp[:, :, dx:dx + w] for dx in range(kw)], axis=1)  # (N, 5, H+4, W)
    if n_rt == 1:
        xs_t = xs.reshape(n, kw, (h + 2 * pad) * w)
    else:
        xs_t = jnp.stack(
            [xs[:, :, r * th: r * th + th + 2 * pad, :] for r in range(n_rt)],
            axis=1)                                                    # (N, n_rt, 5, th+4, W)
        xs_t = xs_t.reshape(n * n_rt, kw, (th + 2 * pad) * w)

    w2 = hpf_weight.reshape(co, kh * kw).astype(jnp.float32)          # (30, 25)

    kernel = functools.partial(_hpf_conv_kernel, th=th, w=w, ksize=kh)
    out_flat = pl.pallas_call(
        kernel,
        out_shape=jax.ShapeDtypeStruct((n, co, h * w), x.dtype),
        grid=(n, n_rt),
        in_specs=[
            # one row-tile of one batch image per step
            pl.BlockSpec((1, kw, (th + 2 * pad) * w),
                         lambda b, r: (b * n_rt + r, 0, 0)),
            # filter bank resident in VMEM (constant block index -> single DMA)
            pl.BlockSpec((co, kh * kw), lambda b, r: (0, 0)),
        ],
        # lane-dense output: last block dim is th*w (full extent or 128-multiple)
        out_specs=pl.BlockSpec((1, co, th * w), lambda b, r: (b, 0, r)),
        compiler_params=pltpu.CompilerParams(
            dimension_semantics=("parallel", "parallel")),
    )(xs_t, w2)
    return out_flat.reshape(n, co, h, w)


# ---------------------------------------------------------------------------
# TLU (dependent class): clamp(x, -t, +t).  Lane-dense tiles, ~4 MiB per block.
# ---------------------------------------------------------------------------

def _tlu_kernel(x_ref, o_ref, *, threshold):
    o_ref[...] = jnp.clip(x_ref[...], -threshold, threshold)


def tlu(x, threshold):
    orig_shape, total = x.shape, x.size
    # Lane-dense 2-D factorization; keep cols >= 128 so stores are unmasked.
    cols = next((c for c in (2048, 1024, 512, 256, 128) if total % c == 0), None)
    if cols is None:
        cols = next((d for d in range(8192, 127, -1) if total % d == 0), None)
    if cols is None:
        # TODO(synk): totals with no divisor >= 128 fall back to the original
        # minor dim (correct, but stores become masked partial vregs).
        cols = orig_shape[-1]
    rows = total // cols
    x2 = x.reshape(rows, cols)

    itemsize = jnp.dtype(x.dtype).itemsize
    # ~4 MiB per buffer; rows multiple of 32 covers f32/bf16/int8 sublane packing.
    max_rows = max(32, ((4 * 1024 * 1024) // (cols * itemsize)) // 32 * 32)
    tile_r = rows if rows <= max_rows else max_rows

    out2 = pl.pallas_call(
        functools.partial(_tlu_kernel, threshold=float(threshold)),
        out_shape=jax.ShapeDtypeStruct((rows, cols), x.dtype),
        grid=(pl.cdiv(rows, tile_r),),
        in_specs=[pl.BlockSpec((tile_r, cols), lambda i: (i, 0))],
        out_specs=pl.BlockSpec((tile_r, cols), lambda i: (i, 0)),
        compiler_params=pltpu.CompilerParams(dimension_semantics=("parallel",)),
    )(x2)
    return out2.reshape(orig_shape)


if __name__ == "__main__":
    key = jax.random.PRNGKey(0)
    kx, kw_key = jax.random.split(key)

    # Input consistent with HPF_W: in_channels=1, small spatial size.
    n, c, h, w = 2, 1, 16, 16
    x = jax.random.normal(kx, (n, c, h, w), dtype=jnp.float32)

    # TODO(synk): the real SRM filter bank (all_normalized_hpf_list) is not in
    # the spec; substitute deterministic zero-mean (high-pass-like) 5x5 filters.
    hpf_weight = jax.random.normal(kw_key, (30, 1, 5, 5), dtype=jnp.float32)
    hpf_weight = hpf_weight - hpf_weight.mean(axis=(2, 3), keepdims=True)

    out = jax.block_until_ready(hpf_w_forward(x, hpf_weight))

    # Reference conv (cross-correlation, same as torch.nn.Conv2d).
    ref = jax.lax.conv_general_dilated(
        x, hpf_weight, window_strides=(1, 1), padding=((2, 2), (2, 2)),
        dimension_numbers=("NCHW", "OIHW", "NCHW"),
        precision=jax.lax.Precision.HIGHEST)
    assert out.shape == (n, 30, h, w) and out.dtype == x.dtype
    # Tolerance leaves headroom for MXU pass rounding of f32 operands; any tap /
    # layout bug would be off by O(1), far outside this band.
    assert bool(jnp.allclose(out, ref, atol=5e-2, rtol=1e-2)), "conv mismatch"

    # TLU is a dependent class (not applied in HPF_W.forward); validate it too.
    t_out = jax.block_until_ready(tlu(out, 3.0))
    assert bool(jnp.allclose(t_out, jnp.clip(out, -3.0, 3.0))), "tlu mismatch"

    print("KERNEL_OK")
</pallas_src>

<mosaic_0001>
module attributes {stable_mosaic.version = 11 : i64} {
  func.func @_hpf_conv_kernel(%arg0: i32, %arg1: i32, %arg2: memref<1x5x320xf32, #tpu.memory_space<vmem>>, %arg3: memref<30x25xf32, #tpu.memory_space<vmem>>, %arg4: memref<1x30x256xf32, #tpu.memory_space<vmem>>) attributes {dimension_semantics = [#tpu.dimension_semantics<parallel>, #tpu.dimension_semantics<parallel>], iteration_bounds = array<i64: 2, 1>, scalar_prefetch = 0 : i64, scratch_operands = 0 : i64, tpu.core_type = #tpu.core_type<tc>, window_params = [{transform_indices = @transform_0, window_bounds = array<i64: 1, 5, 320>}, {pipeline_mode = #tpu.pipeline_mode<synchronous>, transform_indices = @transform_1, window_bounds = array<i64: 30, 25>}, {transform_indices = @transform_2, window_bounds = array<i64: 1, 30, 256>}]} {
    %c0 = arith.constant 0 : index
    %c0_0 = arith.constant 0 : index
    %c0_1 = arith.constant 0 : index
    %0 = vector.load %arg2[%c0, %c0_0, %c0_1] : memref<1x5x320xf32, #tpu.memory_space<vmem>>, vector<1x5x256xf32>
    %1 = vector.shape_cast %0 : vector<1x5x256xf32> to vector<5x256xf32>
    %c0_2 = arith.constant 0 : index
    %c0_3 = arith.constant 0 : index
    %c16 = arith.constant 16 : index
    %2 = vector.load %arg2[%c0_2, %c0_3, %c16] : memref<1x5x320xf32, #tpu.memory_space<vmem>>, vector<1x5x256xf32>
    %3 = vector.shape_cast %2 : vector<1x5x256xf32> to vector<5x256xf32>
    %c0_4 = arith.constant 0 : index
    %c0_5 = arith.constant 0 : index
    %c32 = arith.constant 32 : index
    %4 = vector.load %arg2[%c0_4, %c0_5, %c32] : memref<1x5x320xf32, #tpu.memory_space<vmem>>, vector<1x5x256xf32>
    %5 = vector.shape_cast %4 : vector<1x5x256xf32> to vector<5x256xf32>
    %c0_6 = arith.constant 0 : index
    %c0_7 = arith.constant 0 : index
    %c48 = arith.constant 48 : index
    %6 = vector.load %arg2[%c0_6, %c0_7, %c48] : memref<1x5x320xf32, #tpu.memory_space<vmem>>, vector<1x5x256xf32>
    %7 = vector.shape_cast %6 : vector<1x5x256xf32> to vector<5x256xf32>
    %c0_8 = arith.constant 0 : index
    %c0_9 = arith.constant 0 : index
    %c64 = arith.constant 64 : index
    %8 = vector.load %arg2[%c0_8, %c0_9, %c64] : memref<1x5x320xf32, #tpu.memory_space<vmem>>, vector<1x5x256xf32>
    %9 = vector.shape_cast %8 : vector<1x5x256xf32> to vector<5x256xf32>
    %10 = tpu.concatenate %1, %3, %5, %7, %9 in 0 : vector<5x256xf32>, vector<5x256xf32>, vector<5x256xf32>, vector<5x256xf32>, vector<5x256xf32> -> vector<25x256xf32>
    %c0_10 = arith.constant 0 : index
    %c0_11 = arith.constant 0 : index
    %11 = vector.load %arg3[%c0_10, %c0_11] : memref<30x25xf32, #tpu.memory_space<vmem>>, vector<30x25xf32>
    %cst = arith.constant dense<0.000000e+00> : vector<30x256xf32>
    %12 = tpu.matmul %11, %10, %cst {dimension_numbers = #tpu.dot_dimension_numbers<[1], [0], [0], [1], [0, 0, 1, 1], [], []>} : vector<30x25xf32>, vector<25x256xf32>, vector<30x256xf32> -> vector<30x256xf32>
    %c0_12 = arith.constant 0 : index
    %c0_13 = arith.constant 0 : index
    %c0_14 = arith.constant 0 : index
    %13 = vector.load %arg4[%c0_12, %c0_13, %c0_14] : memref<1x30x256xf32, #tpu.memory_space<vmem>>, vector<1x30x256xf32>
    %14 = vector.shape_cast %13 : vector<1x30x256xf32> to vector<30x256xf32>
    %15 = vector.shape_cast %12 : vector<30x256xf32> to vector<1x30x256xf32>
    tpu.vector_store %arg4[%c0_12, %c0_13, %c0_14], %15 {strides = array<i32>} : memref<1x30x256xf32, #tpu.memory_space<vmem>>, vector<1x30x256xf32>,
    return
  }
  func.func @transform_0(%arg0: i32, %arg1: i32) -> (i32, i32, i32) {
    %c1_i32 = arith.constant 1 : i32
    %0 = arith.muli %arg0, %c1_i32 : i32
    %1 = arith.addi %0, %arg1 : i32
    %c0_i32 = arith.constant 0 : i32
    %c0_i32_0 = arith.constant 0 : i32
    %c0_i32_1 = arith.constant 0 : i32
    return %1, %c0_i32, %c0_i32_0 : i32, i32, i32
  }
  func.func @transform_1(%arg0: i32, %arg1: i32) -> (i32, i32) {
    %c0_i32 = arith.constant 0 : i32
    %c0_i32_0 = arith.constant 0 : i32
    %c0_i32_1 = arith.constant 0 : i32
    return %c0_i32, %c0_i32_0 : i32, i32
  }
  func.func @transform_2(%arg0: i32, %arg1: i32) -> (i32, i32, i32) {
    %c0_i32 = arith.constant 0 : i32
    %c0_i32_0 = arith.constant 0 : i32
    return %arg0, %c0_i32, %arg1 : i32, i32, i32
  }
}

</mosaic_0001>

<llo_original>
// kernel: tpu_custom_call.1
$region0: #{tpu_custom_call.1}
  #allocation0 [shape = 'u32[]', space=smem, size = 0x4, offset = 0x4, fixed_abs, tag = 'smem constant byte address 0x4 - core index']
  #allocation1 [shape = 'u32[72,128]{1,0:T(1,128)}', space=vmem, size = 0x9000, scoped, tag = 'internal scratch']
  %s0 = inlined_call_operand.vmem [shape: f32[2,5,320], index: 0, kind: input, shape index: {}]
  %s1 = inlined_call_operand.vmem [shape: f32[30,25], index: 1, kind: input, shape index: {}]
  %s2 = inlined_call_operand.vmem [shape: f32[2,30,256], index: 2, kind: output, shape index: {}]
  %s3 = sld [smem:[#allocation0]]
  $region41: #{tpu_custom_call.1} parent=0
    _
  %s5 = ssub.s32 1, %s3
  %s6 = scalar_select 0, %s5, %s3
  loop: start=0, step=1, limit=4
  $region2: #{tpu_custom_call.1} parent=0 // loop_pre_header
    _
  $region3: #{tpu_custom_call.1} parent=0 // loop_header
    %s8 = sphi 0, %s12
    %p9 = scmp.ge.s32.totalorder %s8, 4
    %s15 = sphi 0, %s27
    %s16 = sphi 0, %s23
    %s17 = sphi 0, %s15
    %s18 = sphi 0, %s16
    %s19 = sphi 0, %s17
    %s20 = sphi 0, %s18
    %s32 = sphi 0, %s34
    %s35 = sphi 0, %s32
    %s36 = sphi 0, %s35
    %s52 = sphi 0, %s36
    %s56 = sphi 0, %s56
    %s58 = sphi 0, %s56
    %s59 = sphi 0, %s58
    %s73 = sphi 0, %s59
    %s81 = sphi 0, %s83
    %s84 = sphi 0, %s81
    %s85 = sphi 0, %s84
    %s101 = sphi 0, %s85
  $region4: #{tpu_custom_call.1} parent=0 // loop_header_branch
    %11 = sbr.rel (%p9) target = $region8
  $region5: #{tpu_custom_call.1} parent=0 // loop_body
    %s13 = ssub.s32 %s8, 1
    %s14 = ssub.s32 %s8, 2
    %s21 = sadd.s32 1, %s16
    %p22 = scmp.ge.s32.totalorder %s21, 1
    %s23 = scalar_select %p22, 0, %s21
    %s24 = sadd.s32 1, %s15
    %s25 = scalar_select %p22, %s24, %s15
    %p26 = scmp.ge.s32.totalorder %s25, 2
    %s27 = scalar_select %p26, 0, %s25
    %s28 = sadd.s32 %s15, %s16
    %s29 = sadd.s32 %s27, %s23
    %s30 = ssub.s32 %s28, %s29
    %p31 = scmp.eq.s32.totalorder %s30, 0
    %s33 = sadd.s32 %s32, 1
    %s34 = scalar_select %p31, %s32, %s33
    %p37 = pneg %p31
    %p38 = scmp.eq.s32.totalorder %s8, 1
    %p39 = por %p37, %p38
    %p40 = scmp.ne.s32.totalorder %s32, %s35
    %p41 = scmp.eq.s32.totalorder %s8, 0
    %p42 = por %p40, %p41
    %p43 = scmp.ne.s32.totalorder %s32, %s35
    %p44 = scmp.eq.s32.totalorder %s13, 1
    %p45 = por %p43, %p44
    %p46 = scmp.ne.s32.totalorder %s35, %s36
    %p47 = scmp.eq.s32.totalorder %s13, 0
    %p48 = por %p46, %p47
    %p49 = scmp.ne.s32.totalorder %s35, %s36
    %p50 = scmp.eq.s32.totalorder %s14, 1
    %p51 = por %p49, %p50
    %p53 = scmp.ne.s32.totalorder %s36, %s52
    %p54 = scmp.eq.s32.totalorder %s14, 0
    %p55 = por %p53, %p54
    %s57 = sadd.s32 %s56, 1
    %p60 = scmp.eq.s32.totalorder %s8, 1
    %p61 = scmp.ne.s32.totalorder %s56, %s58
    %p62 = scmp.eq.s32.totalorder %s8, 0
    %p63 = por %p61, %p62
    %p64 = scmp.ne.s32.totalorder %s56, %s58
    %p65 = scmp.eq.s32.totalorder %s13, 1
    %p66 = por %p64, %p65
    %p67 = scmp.ne.s32.totalorder %s58, %s59
    %p68 = scmp.eq.s32.totalorder %s13, 0
    %p69 = por %p67, %p68
    %p70 = scmp.ne.s32.totalorder %s58, %s59
    %p71 = scmp.eq.s32.totalorder %s14, 1
    %p72 = por %p70, %p71
    %p74 = scmp.ne.s32.totalorder %s59, %s73
    %p75 = scmp.eq.s32.totalorder %s14, 0
    %p76 = por %p74, %p75
    %s77 = ssub.s32 %s15, %s27
    %s78 = ssub.s32 %s16, %s23
    %s79 = sor.u32 %s77, %s78
    %p80 = scmp.eq.s32.totalorder %s79, 0
    %s82 = sadd.s32 %s81, 1
    %s83 = scalar_select %p80, %s81, %s82
    %p86 = pneg %p80
    %p87 = scmp.eq.s32.totalorder %s8, 1
    %p88 = por %p86, %p87
    %p89 = scmp.ne.s32.totalorder %s81, %s84
    %p90 = scmp.eq.s32.totalorder %s8, 0
    %p91 = por %p89, %p90
    %p92 = scmp.ne.s32.totalorder %s81, %s84
    %p93 = scmp.eq.s32.totalorder %s13, 1
    %p94 = por %p92, %p93
    %p95 = scmp.ne.s32.totalorder %s84, %s85
    %p96 = scmp.eq.s32.totalorder %s13, 0
    %p97 = por %p95, %p96
    %p98 = scmp.ne.s32.totalorder %s84, %s85
    %p99 = scmp.eq.s32.totalorder %s14, 1
    %p100 = por %p98, %p99
    %p102 = scmp.ne.s32.totalorder %s85, %s101
    %p103 = scmp.eq.s32.totalorder %s14, 0
    %p104 = por %p102, %p103
    %p105 = scmp.le.s32.totalorder 1, %s8
    %p106 = scmp.lt.s32.totalorder %s8, 3
    %p107 = pnand %p105, %p106
    %p108 = pneg %p107
    // Predicated region
    $region9: #{tpu_custom_call.1} parent=5 // pred_check
      _
    $region10: #{tpu_custom_call.1} parent=5 // pred_check_branch
      %110 = sbr.rel (%p107) target = $region12
    $region11: #{tpu_custom_call.1} parent=5 // pred_region
      %s111 = ssub.s32 %s8, 1
      // Predicated region
      $region13: #{tpu_custom_call.1} parent=11 // pred_check
        %p112 = pneg %p69
      $region14: #{tpu_custom_call.1} parent=11 // pred_check_branch
        %114 = sbr.rel (%p112) target = $region16
      $region15: #{tpu_custom_call.1} parent=11 // pred_region
        _
      $region16: #{tpu_custom_call.1} parent=11 // pred_fallthru
        _
    $region12: #{tpu_custom_call.1} parent=5 // pred_fallthru
      _
    %p115 = scmp.lt.s32.totalorder %s8, 2
    // Predicated region
    $region17: #{tpu_custom_call.1} parent=5 // pred_check
      %p116 = pneg %p115
    $region18: #{tpu_custom_call.1} parent=5 // pred_check_branch
      %118 = sbr.rel (%p116) target = $region20
    $region19: #{tpu_custom_call.1} parent=5 // pred_region
      // Predicated region
      $region21: #{tpu_custom_call.1} parent=19 // pred_check
        %p119 = pneg %p42
      $region22: #{tpu_custom_call.1} parent=19 // pred_check_branch
        %121 = sbr.rel (%p119) target = $region24
      $region23: #{tpu_custom_call.1} parent=19 // pred_region
        %s122 = sadd.s32 %s15, %s16
        %p123 = scmp.lt.s32.totalorder %s122, 1
        %s124 = scalar_select %p123, %s122, 1
        %s125 = smul.addr %s124, 3
        %s126 = smul.addr %s125, 8
        %s127 = scalar_lea.vmem %s0, %s126
        %s128 = sadd.s32 %s15, %s16
      $region24: #{tpu_custom_call.1} parent=19 // pred_fallthru
        _
    $region20: #{tpu_custom_call.1} parent=5 // pred_fallthru
      _
    %p129 = scmp.le.s32.totalorder 1, %s8
    %p130 = scmp.lt.s32.totalorder %s8, 3
    %p131 = pnand %p129, %p130
    %p132 = pneg %p131
    // Predicated region
    $region25: #{tpu_custom_call.1} parent=5 // pred_check
      _
    $region26: #{tpu_custom_call.1} parent=5 // pred_check_branch
      %134 = sbr.rel (%p131) target = $region28
    $region27: #{tpu_custom_call.1} parent=5 // pred_region
      %s135 = ssub.s32 %s8, 1
      %s136 = sadd.s32 %s17, %s18
      %p137 = scmp.lt.s32.totalorder %s136, 1
      %s138 = scalar_select %p137, %s136, 1
      %s139 = smul.addr %s138, 3
      %s140 = smul.addr %s139, 8
      %s141 = scalar_lea.vmem %s0, %s140
      %p142 = pneg %p48
      %p143 = pneg %p45
      %p144 = pneg %p69
      %p145 = pneg %p66
      %p146 = pneg %p97
      %p147 = pneg %p94
      %s148 = smul.u32 2, %s18
      %p149 = scmp.lt.s32.totalorder %s17, 1
      %s150 = scalar_select %p149, %s17, 1
      %p151 = scmp.lt.s32.totalorder %s148, 1
      %s152 = scalar_select %p151, %s148, 1
      %s153 = smul.addr %s150, 8
      %s154 = sadd.s32 %s152, %s153
      %s155 = smul.addr %s154, 8
      %s156 = scalar_lea.vmem %s2, %s155
      %s157 = sadd.s32 %s17, %s18
      %p158 = scmp.lt.s32.totalorder %s157, 1
      %s159 = scalar_select %p158, %s157, 1
      %s160 = smul.addr %s159, 3
      %s161 = smul.addr %s160, 8
      %s162 = scalar_lea.vmem %s0, %s161
      %s163 = sadd.s32 %s17, %s18
      %s164 = smul.u32 2, %s18
      %p165 = scmp.lt.s32.totalorder %s17, 1
      %s166 = scalar_select %p165, %s17, 1
      %p167 = scmp.lt.s32.totalorder %s164, 1
      %s168 = scalar_select %p167, %s164, 1
      %s169 = smul.addr %s166, 8
      %s170 = sadd.s32 %s168, %s169
      %s171 = smul.addr %s170, 8
      %s172 = scalar_lea.vmem %s2, %s171
      %s173 = smul.u32 2, %s18
      %v174 = vld [vmem:[%s162] sm:$0x1f]
      %v175 = vld [vmem:[%s162 + $0x8] sm:$0x1f]
      %v176 = vld [vmem:[%s162 + $0x10] sm:$0x1f]
      %v180 = vrot.slane %v174, 3
      %v181 = vrot.slane %v175, 3
      %v182 = vrot.slane %v176, 3
      %183 = vrot.lane.b32.xlu0 %v180, 112
      %v184 = vpop.permute.xlu0 %183
      %185 = vrot.lane.b32.xlu0 %v181, 112
      %v186 = vpop.permute.xlu0 %185
      %187 = vrot.lane.b32.xlu0 %v182, 112
      %v188 = vpop.permute.xlu0 %187
      %vm189 = vcmask 916480
      %v190 = vsel %vm189, %v184, %v186
      %v191 = vsel %vm189, %v186, %v188
      %v194 = vrot.slane %v174, 6
      %v195 = vrot.slane %v175, 6
      %v196 = vrot.slane %v176, 6
      %197 = vrot.lane.b32.xlu0 %v194, 96
      %v198 = vpop.permute.xlu0 %197
      %199 = vrot.lane.b32.xlu0 %v195, 96
      %v200 = vpop.permute.xlu0 %199
      %201 = vrot.lane.b32.xlu0 %v196, 96
      %v202 = vpop.permute.xlu0 %201
      %vm203 = vcmask 785408
      %v204 = vsel %vm203, %v198, %v200
      %v205 = vsel %vm203, %v200, %v202
      %v208 = vrot.slane %v174, 1
      %v209 = vrot.slane %v175, 1
      %v210 = vrot.slane %v176, 1
      %211 = vrot.lane.b32.xlu0 %v208, 80
      %v212 = vpop.permute.xlu0 %211
      %213 = vrot.lane.b32.xlu0 %v209, 80
      %v214 = vpop.permute.xlu0 %213
      %215 = vrot.lane.b32.xlu0 %v210, 80
      %v216 = vpop.permute.xlu0 %215
      %vm217 = vcmask 654336
      %v218 = vsel %vm217, %v212, %v214
      %v219 = vsel %vm217, %v214, %v216
      %v222 = vrot.slane %v174, 4
      %v223 = vrot.slane %v175, 4
      %v224 = vrot.slane %v176, 4
      %225 = vrot.lane.b32.xlu0 %v222, 64
      %v226 = vpop.permute.xlu0 %225
      %227 = vrot.lane.b32.xlu0 %v223, 64
      %v228 = vpop.permute.xlu0 %227
      %229 = vrot.lane.b32.xlu0 %v224, 64
      %v230 = vpop.permute.xlu0 %229
      %vm231 = vcmask 523264
      %v232 = vsel %vm231, %v226, %v228
      %v233 = vsel %vm231, %v228, %v230
      %vm236 = vcmask 1044480
      %v237 = vsel %vm236, %v174, %v190
      %v238 = vsel %vm236, %v175, %v191
      %vm239 = vcmask 1041408
      %v240 = vsel %vm239, %v190, %v204
      %v241 = vsel %vm239, %v191, %v205
      %vm242 = vcmask 1046528
      %v243 = vsel %vm242, %v240, %v218
      %v244 = vsel %vm242, %v241, %v219
      %vm245 = vcmask 1043456
      %v246 = vsel %vm245, %v218, %v232
      %v247 = vsel %vm245, %v219, %v233
      %v248 = vld [vmem:[%s1] sm:$0xff]
      %v249 = vld [vmem:[%s1 + $0x8] sm:$0xff]
      %v250 = vld [vmem:[%s1 + $0x10] sm:$0xff]
      %v251 = vld [vmem:[%s1 + $0x18] sm:$0x3f]
      %vm252 = vcmask 203776
      %v254 = vsel %vm252, %v248, 0
      %v257 = vsel %vm252, %v249, 0
      %v260 = vsel %vm252, %v250, 0
      %v263 = vsel %vm252, %v251, 0
      %vm265 = vcmask 1040384
      %v266 = vsel %vm265, %v232, 0
      %v268 = vsel %vm265, %v233, 0
      %270 = vmatpush.msra.mxu0 0.0
      %271 = vmatpush.msra.mxu0 0.0
      %272 = vmatpush.msra.mxu0 0.0
      %273 = vmatpush.msra.mxu0 0.0
      %274 = vmatpush.msra.mxu0 0.0
      %275 = vmatpush.msra.mxu0 0.0
      %276 = vmatpush.msra.mxu0 0.0
      %277 = vmatpush.msra.mxu0 0.0
      %278 = vmatpush.msra.mxu0 0.0
      %279 = vmatpush.msra.mxu0 0.0
      %280 = vmatpush.msra.mxu0 0.0
      %281 = vmatpush.msra.mxu0 0.0
      %282 = vmatpush.msra.mxu0 %v266
      %283 = vmatpush.msra.mxu0 %v246
      %284 = vmatpush.msra.mxu0 %v243
      %285 = vmatpush.msra.mxu0 %v237
      %286 = vmatmul.f32.gmra.mxu0 %v254
      %v287 = vpop.f32.mrf.mxu0
      %v288 = vadd.f32 0.0, %v287
      %289 = vmatmul.f32.gmra.mxu0 %v257
      %v290 = vpop.f32.mrf.mxu0
      %v291 = vadd.f32 0.0, %v290
      %292 = vmatmul.f32.gmra.mxu0 %v260
      %v293 = vpop.f32.mrf.mxu0
      %v294 = vadd.f32 0.0, %v293
      %295 = vmatmul.f32.gmra.mxu0 %v263
      %v296 = vpop.f32.mrf.mxu0
      %v297 = vadd.f32 0.0, %v296
      %298 = vdwg.mxu0
      %299 = vmatpush.msra.mxu0 0.0
      %300 = vmatpush.msra.mxu0 0.0
      %301 = vmatpush.msra.mxu0 0.0
      %302 = vmatpush.msra.mxu0 0.0
      %303 = vmatpush.msra.mxu0 0.0
      %304 = vmatpush.msra.mxu0 0.0
      %305 = vmatpush.msra.mxu0 0.0
      %306 = vmatpush.msra.mxu0 0.0
      %307 = vmatpush.msra.mxu0 0.0
      %308 = vmatpush.msra.mxu0 0.0
      %309 = vmatpush.msra.mxu0 0.0
      %310 = vmatpush.msra.mxu0 0.0
      %311 = vmatpush.msra.mxu0 %v268
      %312 = vmatpush.msra.mxu0 %v247
      %313 = vmatpush.msra.mxu0 %v244
      %314 = vmatpush.msra.mxu0 %v238
      %315 = vmatmul.f32.gmra.mxu0 %v254
      %v316 = vpop.f32.mrf.mxu0
      %v317 = vadd.f32 0.0, %v316
      %318 = vmatmul.f32.gmra.mxu0 %v257
      %v319 = vpop.f32.mrf.mxu0
      %v320 = vadd.f32 0.0, %v319
      %321 = vmatmul.f32.gmra.mxu0 %v260
      %v322 = vpop.f32.mrf.mxu0
      %v323 = vadd.f32 0.0, %v322
      %324 = vmatmul.f32.gmra.mxu0 %v263
      %v325 = vpop.f32.mrf.mxu0
      %v326 = vadd.f32 0.0, %v325
      %327 = vdwg.mxu0
      %328 = vst [vmem:[%s172] sm:$0xff] %v288
      %329 = vst [vmem:[%s172 + $0x8] sm:$0xff] %v317
      %330 = vst [vmem:[%s172 + $0x10] sm:$0xff] %v291
      %331 = vst [vmem:[%s172 + $0x18] sm:$0xff] %v320
      %332 = vst [vmem:[%s172 + $0x20] sm:$0xff] %v294
      %333 = vst [vmem:[%s172 + $0x28] sm:$0xff] %v323
      %334 = vst [vmem:[%s172 + $0x30] sm:$0x3f] %v297
      %335 = vst [vmem:[%s172 + $0x38] sm:$0x3f] %v326
      %s336 = smul.u32 2, %s18
      %p337 = scmp.lt.s32.totalorder %s17, 1
      %s338 = scalar_select %p337, %s17, 1
      %p339 = scmp.lt.s32.totalorder %s336, 1
      %s340 = scalar_select %p339, %s336, 1
      %s341 = smul.addr %s338, 8
      %s342 = sadd.s32 %s340, %s341
      %s343 = smul.addr %s342, 8
      %s344 = scalar_lea.vmem %s2, %s343
      // Predicated region
      $region29: #{tpu_custom_call.1} parent=27 // pred_check
        %p345 = pneg %p94
      $region30: #{tpu_custom_call.1} parent=27 // pred_check_branch
        %347 = sbr.rel (%p345) target = $region32
      $region31: #{tpu_custom_call.1} parent=27 // pred_region
        %s348 = smul.u32 2, %s18
      $region32: #{tpu_custom_call.1} parent=27 // pred_fallthru
        _
    $region28: #{tpu_custom_call.1} parent=5 // pred_fallthru
      _
    %p349 = scmp.le.s32.totalorder 2, %s8
    // Predicated region
    $region33: #{tpu_custom_call.1} parent=5 // pred_check
      %p350 = pneg %p349
    $region34: #{tpu_custom_call.1} parent=5 // pred_check_branch
      %352 = sbr.rel (%p350) target = $region36
    $region35: #{tpu_custom_call.1} parent=5 // pred_region
      %s353 = ssub.s32 %s8, 2
      // Predicated region
      $region37: #{tpu_custom_call.1} parent=35 // pred_check
        %p354 = pneg %p100
      $region38: #{tpu_custom_call.1} parent=35 // pred_check_branch
        %356 = sbr.rel (%p354) target = $region40
      $region39: #{tpu_custom_call.1} parent=35 // pred_region
        %s357 = smul.u32 2, %s20
        %p358 = scmp.lt.s32.totalorder %s19, 1
        %s359 = scalar_select %p358, %s19, 1
        %p360 = scmp.lt.s32.totalorder %s357, 1
        %s361 = scalar_select %p360, %s357, 1
        %s362 = smul.addr %s359, 8
        %s363 = sadd.s32 %s361, %s362
        %s364 = smul.addr %s363, 8
        %s365 = scalar_lea.vmem %s2, %s364
      $region40: #{tpu_custom_call.1} parent=35 // pred_fallthru
        _
    $region36: #{tpu_custom_call.1} parent=5 // pred_fallthru
      _
  $region6: #{tpu_custom_call.1} parent=0 // loop_footer
    %s12 = sadd.s32 1, %s8
  $region7: #{tpu_custom_call.1} parent=0 // loop_footer_branch
    %7 = sbr.rel target = $region3
  $region8: #{tpu_custom_call.1} parent=0 // loop_exit
    _

</llo_original>
